<compile_context>
chip_gen: v6e
topology: v6e:2x2x1
jax: 0.10.0
libtpu: 0.0.40
codegen_flags: <defaults>
</compile_context>

<pallas_src>
import math

import jax
import jax.numpy as jnp
from jax import lax
from jax.experimental import pallas as pl
from jax.experimental.pallas import tpu as pltpu


def _round_up(x, m):
    return ((x + m - 1) // m) * m


def _gelu_exact(x):
    # x * 0.5 * (1 + erf(x / sqrt(2)))  -- matches the PyTorch reference gelu
    return x * 0.5 * (1.0 + lax.erf(x / math.sqrt(2.0)))


def mlm_head_kernel(x_ref, wd_ref, bd_ref, g_ref, beta_ref, wdec_ref, bdec_ref,
                    out_ref, h_ref):
    """BertLMPredictionHead, tiled over (row tiles i, vocab tiles j).

    Under j == 0:  h = LayerNorm(gelu(x @ Wd + bd))  -> cached in VMEM scratch.
    Every j:       out[:, j-tile] = h @ Wdec[:, j-tile] + b_dec[j-tile]
    """
    j = pl.program_id(1)

    @pl.when(j == 0)
    def _():
        x = x_ref[...]                                        # (tm, H) bf16
        # dense (bf16 operands, f32 accumulation on the MXU)
        h = jnp.dot(x, wd_ref[...], preferred_element_type=jnp.float32)
        h = h + bd_ref[...]                                   # (1, H) broadcast
        # exact gelu via erf (f32)
        h = _gelu_exact(h)
        # LayerNorm over hidden dim, eps = 1e-12 (biased variance, as in torch)
        mean = jnp.mean(h, axis=-1, keepdims=True)
        centered = h - mean
        var = jnp.mean(centered * centered, axis=-1, keepdims=True)
        inv = lax.rsqrt(var + 1e-12)
        h_ref[...] = centered * inv * g_ref[...] + beta_ref[...]

    # decoder (tied embedding weights, transposed) for this vocab tile
    h_bf = h_ref[...].astype(jnp.bfloat16)
    logits = jnp.dot(h_bf, wdec_ref[...], preferred_element_type=jnp.float32)
    out_ref[...] = (logits + bdec_ref[...]).astype(out_ref.dtype)


def seq_rel_kernel(x_ref, w_ref, b_ref, out_ref):
    """seq_relationship: out = pooled @ W + b, W/b lane-padded to 128 cols."""
    out = jnp.dot(x_ref[...], w_ref[...], preferred_element_type=jnp.float32)
    out_ref[...] = (out + b_ref[...]).astype(out_ref.dtype)


def bert_pretraining_heads(sequence_output, pooled_output, params,
                           *, tm=256, tv=1024, out_dtype=jnp.float32):
    """Returns (prediction_scores [B,S,V], seq_relationship_score [B,2])."""
    B, S, H = sequence_output.shape
    V = params["decoder_w_t"].shape[1]
    M = B * S

    # ---- tiling: clamp to the (padded) problem size, keep (8,128) alignment
    tm_eff = int(min(tm, _round_up(M, 8)))
    tv_eff = int(min(tv, _round_up(V, 128)))
    M_pad = _round_up(M, tm_eff)
    V_pad = _round_up(V, tv_eff)

    # ---- operand prep: bf16 for MXU operands, f32 for bias/LN params
    x = sequence_output.reshape(M, H)
    if M_pad != M:
        x = jnp.pad(x, ((0, M_pad - M), (0, 0)))
    x_bf = x.astype(jnp.bfloat16)
    wd_bf = params["dense_w_t"].astype(jnp.bfloat16)
    wdec_bf = params["decoder_w_t"].astype(jnp.bfloat16)
    bdec = params["decoder_b"]
    if V_pad != V:
        wdec_bf = jnp.pad(wdec_bf, ((0, 0), (0, V_pad - V)))
        bdec = jnp.pad(bdec, ((0, 0), (0, V_pad - V)))

    grid = (M_pad // tm_eff, V_pad // tv_eff)

    # ---- VMEM budget: resident dense W + double-buffered x / decoder-W /
    # output tiles + f32 scratch; cap so it still fits v7x's 64 MiB physical.
    out_bytes = jnp.dtype(out_dtype).itemsize
    est = (2 * H * H * 2                      # dense W (bf16, buffered)
           + 2 * tm_eff * H * 2               # x tiles (bf16)
           + 2 * H * tv_eff * 2               # decoder W tiles (bf16)
           + 2 * tm_eff * tv_eff * out_bytes  # output tiles
           + tm_eff * H * 4                   # hidden scratch (f32)
           + 8 * (H + tv_eff) * 4)            # biases / LN params
    vmem_limit = int(min(max(32 * 1024 * 1024, 2 * est), 56 * 1024 * 1024))

    mlm = pl.pallas_call(
        mlm_head_kernel,
        out_shape=jax.ShapeDtypeStruct((M_pad, V_pad), out_dtype),
        grid=grid,
        in_specs=[
            pl.BlockSpec((tm_eff, H), lambda i, j: (i, 0)),   # x rows (resident over j)
            pl.BlockSpec((H, H), lambda i, j: (0, 0)),        # dense W (resident)
            pl.BlockSpec((1, H), lambda i, j: (0, 0)),        # dense bias
            pl.BlockSpec((1, H), lambda i, j: (0, 0)),        # LN gamma
            pl.BlockSpec((1, H), lambda i, j: (0, 0)),        # LN beta
            pl.BlockSpec((H, tv_eff), lambda i, j: (0, j)),   # decoder W tile (streams)
            pl.BlockSpec((1, tv_eff), lambda i, j: (0, j)),   # decoder bias tile
        ],
        out_specs=pl.BlockSpec((tm_eff, tv_eff), lambda i, j: (i, j)),
        scratch_shapes=[pltpu.VMEM((tm_eff, H), jnp.float32)],
        compiler_params=pltpu.CompilerParams(
            dimension_semantics=("parallel", "arbitrary"),
            vmem_limit_bytes=vmem_limit),
    )(
        x_bf,
        wd_bf, params["dense_b"],
        params["ln_gamma"], params["ln_beta"],
        wdec_bf, bdec,
    )
    prediction_scores = mlm[:M, :V].reshape(B, S, V)

    # ---- seq_relationship head: pad the 2-wide output to a lane-dense 128
    # slab inside the kernel, slice back outside (negligible work).
    n_cls = params["seqrel_w_t"].shape[1]
    pad_cls = 128 - n_cls
    w_sr = jnp.pad(params["seqrel_w_t"], ((0, 0), (0, pad_cls))).astype(jnp.bfloat16)
    b_sr = jnp.pad(params["seqrel_b"], ((0, 0), (0, pad_cls)))
    pooled_bf = pooled_output.astype(jnp.bfloat16)

    seq_rel_pad = pl.pallas_call(
        seq_rel_kernel,
        out_shape=jax.ShapeDtypeStruct((B, 128), jnp.float32),
        in_specs=[
            pl.BlockSpec((B, H), lambda: (0, 0)),
            pl.BlockSpec((H, 128), lambda: (0, 0)),
            pl.BlockSpec((1, 128), lambda: (0, 0)),
        ],
        out_specs=pl.BlockSpec((B, 128), lambda: (0, 0)),
    )(pooled_bf, w_sr, b_sr)
    seq_rel = seq_rel_pad[:, :n_cls]

    return prediction_scores, seq_rel


def init_params(key, hidden_size, vocab_size):
    """Deterministic synthetic parameters (shapes follow the PyTorch module)."""
    ks = jax.random.split(key, 6)
    scale = 0.02
    # nn.Linear(H, H): weight [H, H] -> stored transposed [in, out]
    dense_w_t = scale * jax.random.normal(ks[0], (hidden_size, hidden_size),
                                          jnp.float32)
    dense_b = scale * jax.random.normal(ks[1], (1, hidden_size), jnp.float32)
    # LayerNorm(H): gamma init 1, beta init 0
    ln_gamma = jnp.ones((1, hidden_size), jnp.float32)
    ln_beta = jnp.zeros((1, hidden_size), jnp.float32)
    # tied embedding weights: [V, H]; decoder uses its transpose [H, V]
    emb_w = scale * jax.random.normal(ks[2], (vocab_size, hidden_size),
                                      jnp.float32)
    decoder_w_t = emb_w.T
    decoder_b = jnp.zeros((1, vocab_size), jnp.float32)
    # seq_relationship: nn.Linear(H, 2)
    seqrel_w_t = scale * jax.random.normal(ks[3], (hidden_size, 2), jnp.float32)
    seqrel_b = scale * jax.random.normal(ks[4], (1, 2), jnp.float32)
    return {
        "dense_w_t": dense_w_t, "dense_b": dense_b,
        "ln_gamma": ln_gamma, "ln_beta": ln_beta,
        "decoder_w_t": decoder_w_t, "decoder_b": decoder_b,
        "seqrel_w_t": seqrel_w_t, "seqrel_b": seqrel_b,
    }


def _reference(sequence_output, pooled_output, params):
    """Pure-JAX reference of the PyTorch forward, matching the kernel's
    compute dtypes (bf16 MXU operands, f32 accumulation / LN)."""
    x = sequence_output.astype(jnp.bfloat16)
    wd = params["dense_w_t"].astype(jnp.bfloat16)
    h = jnp.dot(x, wd, preferred_element_type=jnp.float32) + params["dense_b"][0]
    h = h * 0.5 * (1.0 + lax.erf(h / math.sqrt(2.0)))
    mean = jnp.mean(h, axis=-1, keepdims=True)
    var = jnp.mean((h - mean) ** 2, axis=-1, keepdims=True)
    h = (h - mean) * lax.rsqrt(var + 1e-12) * params["ln_gamma"][0] \
        + params["ln_beta"][0]
    wdec = params["decoder_w_t"].astype(jnp.bfloat16)
    scores = jnp.dot(h.astype(jnp.bfloat16), wdec,
                     preferred_element_type=jnp.float32) + params["decoder_b"][0]
    seq_rel = jnp.dot(pooled_output.astype(jnp.bfloat16),
                      params["seqrel_w_t"].astype(jnp.bfloat16),
                      preferred_element_type=jnp.float32) + params["seqrel_b"][0]
    return scores, seq_rel


if __name__ == "__main__":
    B, S, H, V = 2, 8, 128, 256
    key = jax.random.PRNGKey(0)
    k_seq, k_pool, k_par = jax.random.split(key, 3)

    sequence_output = jax.random.normal(k_seq, (B, S, H), jnp.float32)
    pooled_output = jax.random.normal(k_pool, (B, H), jnp.float32)
    params = init_params(k_par, H, V)

    pred_scores, seq_rel_score = jax.block_until_ready(
        bert_pretraining_heads(sequence_output, pooled_output, params))

    ref_scores, ref_seq_rel = _reference(sequence_output, pooled_output, params)

    assert pred_scores.shape == (B, S, V)
    assert seq_rel_score.shape == (B, 2)
    assert jnp.allclose(pred_scores, ref_scores, atol=1e-2, rtol=1e-2)
    assert jnp.allclose(seq_rel_score, ref_seq_rel, atol=1e-2, rtol=1e-2)

    print("KERNEL_OK")
</pallas_src>

<mosaic_0001>
module attributes {stable_mosaic.version = 11 : i64} {
  func.func @mlm_head_kernel(%arg0: i32, %arg1: i32, %arg2: memref<16x128xbf16, #tpu.memory_space<vmem>>, %arg3: memref<128x128xbf16, #tpu.memory_space<vmem>>, %arg4: memref<1x128xf32, #tpu.memory_space<vmem>>, %arg5: memref<1x128xf32, #tpu.memory_space<vmem>>, %arg6: memref<1x128xf32, #tpu.memory_space<vmem>>, %arg7: memref<128x256xbf16, #tpu.memory_space<vmem>>, %arg8: memref<1x256xf32, #tpu.memory_space<vmem>>, %arg9: memref<16x256xf32, #tpu.memory_space<vmem>>, %arg10: memref<16x128xf32, #tpu.memory_space<vmem>>) attributes {dimension_semantics = [#tpu.dimension_semantics<parallel>, #tpu.dimension_semantics<arbitrary>], iteration_bounds = array<i64: 1, 1>, scalar_prefetch = 0 : i64, scratch_operands = 1 : i64, tpu.core_type = #tpu.core_type<tc>, window_params = [{transform_indices = @transform_0, window_bounds = array<i64: 16, 128>}, {pipeline_mode = #tpu.pipeline_mode<synchronous>, transform_indices = @transform_1, window_bounds = array<i64: 128, 128>}, {pipeline_mode = #tpu.pipeline_mode<synchronous>, transform_indices = @transform_2, window_bounds = array<i64: 1, 128>}, {pipeline_mode = #tpu.pipeline_mode<synchronous>, transform_indices = @transform_3, window_bounds = array<i64: 1, 128>}, {pipeline_mode = #tpu.pipeline_mode<synchronous>, transform_indices = @transform_4, window_bounds = array<i64: 1, 128>}, {transform_indices = @transform_5, window_bounds = array<i64: 128, 256>}, {transform_indices = @transform_6, window_bounds = array<i64: 1, 256>}, {transform_indices = @transform_7, window_bounds = array<i64: 16, 256>}]} {
    %c0_i32 = arith.constant 0 : i32
    %0 = arith.cmpi eq, %arg1, %c0_i32 : i32
    %1 = arith.extui %0 : i1 to i32
    %c0_i32_0 = arith.constant 0 : i32
    %2 = arith.cmpi ne, %1, %c0_i32_0 : i32
    scf.if %2 {
      %c0_8 = arith.constant 0 : index
      %c0_9 = arith.constant 0 : index
      %11 = vector.load %arg2[%c0_8, %c0_9] : memref<16x128xbf16, #tpu.memory_space<vmem>>, vector<16x128xbf16>
      %c0_10 = arith.constant 0 : index
      %c0_11 = arith.constant 0 : index
      %12 = vector.load %arg3[%c0_10, %c0_11] : memref<128x128xbf16, #tpu.memory_space<vmem>>, vector<128x128xbf16>
      %cst_12 = arith.constant dense<0.000000e+00> : vector<16x128xf32>
      %13 = tpu.matmul %11, %12, %cst_12 {dimension_numbers = #tpu.dot_dimension_numbers<[1], [0], [0], [1], [0, 0, 1, 1], [], []>} : vector<16x128xbf16>, vector<128x128xbf16>, vector<16x128xf32> -> vector<16x128xf32>
      %c0_13 = arith.constant 0 : index
      %c0_14 = arith.constant 0 : index
      %14 = vector.load %arg4[%c0_13, %c0_14] : memref<1x128xf32, #tpu.memory_space<vmem>>, vector<1x128xf32>
      %15 = vector.broadcast %14 : vector<1x128xf32> to vector<16x128xf32>
      %16 = arith.addf %13, %15 : vector<16x128xf32>
      %cst_15 = arith.constant 5.000000e-01 : f32
      %17 = vector.broadcast %cst_15 : f32 to vector<16x128xf32>
      %18 = arith.mulf %16, %17 : vector<16x128xf32>
      %cst_16 = arith.constant 1.41421354 : f32
      %19 = vector.broadcast %cst_16 : f32 to vector<16x128xf32>
      %20 = arith.divf %16, %19 : vector<16x128xf32>
      %21 = math.erf %20 : vector<16x128xf32>
      %cst_17 = arith.constant 1.000000e+00 : f32
      %22 = vector.broadcast %cst_17 : f32 to vector<16x128xf32>
      %23 = arith.addf %22, %21 : vector<16x128xf32>
      %24 = arith.mulf %18, %23 : vector<16x128xf32>
      %cst_18 = arith.constant dense<0.000000e+00> : vector<16xf32>
      %25 = vector.multi_reduction <add>, %24, %cst_18 [1] : vector<16x128xf32> to vector<16xf32>
      %26 = vector.shape_cast %25 : vector<16xf32> to vector<16x1xf32>
      %cst_19 = arith.constant 1.280000e+02 : f32
      %27 = vector.broadcast %cst_19 : f32 to vector<16x1xf32>
      %28 = arith.divf %26, %27 : vector<16x1xf32>
      %29 = vector.broadcast %28 : vector<16x1xf32> to vector<16x128xf32>
      %30 = arith.subf %24, %29 : vector<16x128xf32>
      %31 = arith.mulf %30, %30 : vector<16x128xf32>
      %cst_20 = arith.constant dense<0.000000e+00> : vector<16xf32>
      %32 = vector.multi_reduction <add>, %31, %cst_20 [1] : vector<16x128xf32> to vector<16xf32>
      %33 = vector.shape_cast %32 : vector<16xf32> to vector<16x1xf32>
      %cst_21 = arith.constant 1.280000e+02 : f32
      %34 = vector.broadcast %cst_21 : f32 to vector<16x1xf32>
      %35 = arith.divf %33, %34 : vector<16x1xf32>
      %cst_22 = arith.constant 9.99999996E-13 : f32
      %36 = vector.broadcast %cst_22 : f32 to vector<16x1xf32>
      %37 = arith.addf %35, %36 : vector<16x1xf32>
      %38 = math.rsqrt %37 : vector<16x1xf32>
      %39 = vector.broadcast %38 : vector<16x1xf32> to vector<16x128xf32>
      %40 = arith.mulf %30, %39 : vector<16x128xf32>
      %c0_23 = arith.constant 0 : index
      %c0_24 = arith.constant 0 : index
      %41 = vector.load %arg5[%c0_23, %c0_24] : memref<1x128xf32, #tpu.memory_space<vmem>>, vector<1x128xf32>
      %42 = vector.broadcast %41 : vector<1x128xf32> to vector<16x128xf32>
      %43 = arith.mulf %40, %42 : vector<16x128xf32>
      %c0_25 = arith.constant 0 : index
      %c0_26 = arith.constant 0 : index
      %44 = vector.load %arg6[%c0_25, %c0_26] : memref<1x128xf32, #tpu.memory_space<vmem>>, vector<1x128xf32>
      %45 = vector.broadcast %44 : vector<1x128xf32> to vector<16x128xf32>
      %46 = arith.addf %43, %45 : vector<16x128xf32>
      %c0_27 = arith.constant 0 : index
      %c0_28 = arith.constant 0 : index
      %47 = vector.load %arg10[%c0_27, %c0_28] : memref<16x128xf32, #tpu.memory_space<vmem>>, vector<16x128xf32>
      tpu.vector_store %arg10[%c0_27, %c0_28], %46 {strides = array<i32>} : memref<16x128xf32, #tpu.memory_space<vmem>>, vector<16x128xf32>,
    } else {
    }
    %c0 = arith.constant 0 : index
    %c0_1 = arith.constant 0 : index
    %3 = vector.load %arg10[%c0, %c0_1] : memref<16x128xf32, #tpu.memory_space<vmem>>, vector<16x128xf32>
    %4 = arith.truncf %3 : vector<16x128xf32> to vector<16x128xbf16>
    %c0_2 = arith.constant 0 : index
    %c0_3 = arith.constant 0 : index
    %5 = vector.load %arg7[%c0_2, %c0_3] : memref<128x256xbf16, #tpu.memory_space<vmem>>, vector<128x256xbf16>
    %cst = arith.constant dense<0.000000e+00> : vector<16x256xf32>
    %6 = tpu.matmul %4, %5, %cst {dimension_numbers = #tpu.dot_dimension_numbers<[1], [0], [0], [1], [0, 0, 1, 1], [], []>} : vector<16x128xbf16>, vector<128x256xbf16>, vector<16x256xf32> -> vector<16x256xf32>
    %c0_4 = arith.constant 0 : index
    %c0_5 = arith.constant 0 : index
    %7 = vector.load %arg8[%c0_4, %c0_5] : memref<1x256xf32, #tpu.memory_space<vmem>>, vector<1x256xf32>
    %8 = vector.broadcast %7 : vector<1x256xf32> to vector<16x256xf32>
    %9 = arith.addf %6, %8 : vector<16x256xf32>
    %c0_6 = arith.constant 0 : index
    %c0_7 = arith.constant 0 : index
    %10 = vector.load %arg9[%c0_6, %c0_7] : memref<16x256xf32, #tpu.memory_space<vmem>>, vector<16x256xf32>
    tpu.vector_store %arg9[%c0_6, %c0_7], %9 {strides = array<i32>} : memref<16x256xf32, #tpu.memory_space<vmem>>, vector<16x256xf32>,
    return
  }
  func.func @transform_0(%arg0: i32, %arg1: i32) -> (i32, i32) {
    %c0_i32 = arith.constant 0 : i32
    %c0_i32_0 = arith.constant 0 : i32
    return %arg0, %c0_i32 : i32, i32
  }
  func.func @transform_1(%arg0: i32, %arg1: i32) -> (i32, i32) {
    %c0_i32 = arith.constant 0 : i32
    %c0_i32_0 = arith.constant 0 : i32
    %c0_i32_1 = arith.constant 0 : i32
    return %c0_i32, %c0_i32_0 : i32, i32
  }
  func.func @transform_2(%arg0: i32, %arg1: i32) -> (i32, i32) {
    %c0_i32 = arith.constant 0 : i32
    %c0_i32_0 = arith.constant 0 : i32
    %c0_i32_1 = arith.constant 0 : i32
    return %c0_i32, %c0_i32_0 : i32, i32
  }
  func.func @transform_3(%arg0: i32, %arg1: i32) -> (i32, i32) {
    %c0_i32 = arith.constant 0 : i32
    %c0_i32_0 = arith.constant 0 : i32
    %c0_i32_1 = arith.constant 0 : i32
    return %c0_i32, %c0_i32_0 : i32, i32
  }
  func.func @transform_4(%arg0: i32, %arg1: i32) -> (i32, i32) {
    %c0_i32 = arith.constant 0 : i32
    %c0_i32_0 = arith.constant 0 : i32
    %c0_i32_1 = arith.constant 0 : i32
    return %c0_i32, %c0_i32_0 : i32, i32
  }
  func.func @transform_5(%arg0: i32, %arg1: i32) -> (i32, i32) {
    %c0_i32 = arith.constant 0 : i32
    %c0_i32_0 = arith.constant 0 : i32
    return %c0_i32, %arg1 : i32, i32
  }
  func.func @transform_6(%arg0: i32, %arg1: i32) -> (i32, i32) {
    %c0_i32 = arith.constant 0 : i32
    %c0_i32_0 = arith.constant 0 : i32
    return %c0_i32, %arg1 : i32, i32
  }
  func.func @transform_7(%arg0: i32, %arg1: i32) -> (i32, i32) {
    %c0_i32 = arith.constant 0 : i32
    return %arg0, %arg1 : i32, i32
  }
}

</mosaic_0001>

<llo_original>
// kernel: tpu_custom_call.1
$region0: #{tpu_custom_call.1}
  #allocation0 [shape = 'u32[]', space=smem, size = 0x4, offset = 0x4, fixed_abs, tag = 'smem constant byte address 0x4 - core index']
  #allocation1 [shape = 'u32[144,128]{1,0:T(1,128)}', space=vmem, size = 0x12000, scoped, tag = 'internal scratch']
  #allocation2 [shape = 'f32[16,128]{1,0:T(8,128)}', space=vmem, size = 0x2000, scoped, tag = 'scratch operand']
  %s0 = inlined_call_operand.hbm [shape: bf16[16,128], index: 0, kind: input, shape index: {}]
  %s1 = inlined_call_operand.hbm [shape: bf16[128,128], index: 1, kind: input, shape index: {}]
  %s2 = inlined_call_operand.vmem [shape: f32[1,128], index: 2, kind: input, shape index: {}]
  %s3 = inlined_call_operand.vmem [shape: f32[1,128], index: 3, kind: input, shape index: {}]
  %s4 = inlined_call_operand.vmem [shape: f32[1,128], index: 4, kind: input, shape index: {}]
  %s5 = inlined_call_operand.hbm [shape: bf16[128,256], index: 5, kind: input, shape index: {}]
  %s6 = inlined_call_operand.vmem [shape: f32[1,256], index: 6, kind: input, shape index: {}]
  %s7 = inlined_call_operand.hbm [shape: f32[16,256], index: 7, kind: output, shape index: {}]
  %s8 = sld [smem:[#allocation0]]
  $region54: #{tpu_custom_call.1} parent=0
    _
  %s10 = ssub.s32 1, %s8
  %s11 = scalar_select 0, %s10, %s8
  $region1: #{tpu_custom_call.1} parent=0
    #allocation3 [shape = 'u8[4096]{0}', space=vmem, size = 0x1000, scoped, tag = 'input window, operand 0, single buffered']
    #allocation4 [shape = 's32[1]{0}', space=sflag, size = 0x4, scoped, tag = 'scoped memory for tpu_custom_call.1']
    #allocation5 [shape = 's32[1]{0}', space=sflag, size = 0x4, scoped, tag = 'scoped memory for tpu_custom_call.1']
    #allocation6 [shape = 'u8[32768]{0}', space=vmem, size = 0x8000, scoped, tag = 'input window, operand 1, single buffered']
    #allocation7 [shape = 's32[1]{0}', space=sflag, size = 0x4, scoped, tag = 'scoped memory for tpu_custom_call.1']
    #allocation8 [shape = 'u8[65536]{0}', space=vmem, size = 0x10000, scoped, tag = 'input window, operand 5, single buffered']
    #allocation9 [shape = 'u8[16384]{0}', space=vmem, size = 0x4000, scoped, tag = 'output window, operand 0, single buffered']
    %12 = vsyncpa [#allocation4], 0
    %13 = vsyncpa [#allocation7], 0
    %14 = vsyncpa [#allocation5], 0
    // Predicated region
    $region2: #{tpu_custom_call.1} parent=1 // pred_check
      _
    $region3: #{tpu_custom_call.1} parent=1 // pred_check_branch
      %16 = sbr.rel (0) target = $region5
    $region4: #{tpu_custom_call.1} parent=1 // pred_region
      %s18 = ssub.s32 128, 128
      %19 = vsyncadd [#allocation4], %s18
      %s20 = sshll.u32 [#allocation3], 4
      %s21 = int_to_ptr.vmem [resolvable:$true] %s20
      %26 = dma.hbm_to_vmem [thread:$0]  %s0, 128, %s21, [#allocation4], 64, 64, 4
    $region5: #{tpu_custom_call.1} parent=1 // pred_fallthru
      _
    // Predicated region
    $region6: #{tpu_custom_call.1} parent=1 // pred_check
      _
    $region7: #{tpu_custom_call.1} parent=1 // pred_check_branch
      %28 = sbr.rel (0) target = $region9
    $region8: #{tpu_custom_call.1} parent=1 // pred_region
      %s30 = ssub.s32 1024, 1024
      %31 = vsyncadd [#allocation7], %s30
      %s32 = sshll.u32 [#allocation6], 4
      %s33 = int_to_ptr.vmem [resolvable:$true] %s32
      %38 = dma.hbm_to_vmem [thread:$0]  %s1, 1024, %s33, [#allocation7], 64, 64, 4
    $region9: #{tpu_custom_call.1} parent=1 // pred_fallthru
      _
    // Predicated region
    $region10: #{tpu_custom_call.1} parent=1 // pred_check
      _
    $region11: #{tpu_custom_call.1} parent=1 // pred_check_branch
      %40 = sbr.rel (0) target = $region13
    $region12: #{tpu_custom_call.1} parent=1 // pred_region
      _
    $region13: #{tpu_custom_call.1} parent=1 // pred_fallthru
      _
    // Predicated region
    $region14: #{tpu_custom_call.1} parent=1 // pred_check
      _
    $region15: #{tpu_custom_call.1} parent=1 // pred_check_branch
      %42 = sbr.rel (0) target = $region17
    $region16: #{tpu_custom_call.1} parent=1 // pred_region
      _
    $region17: #{tpu_custom_call.1} parent=1 // pred_fallthru
      _
    // Predicated region
    $region18: #{tpu_custom_call.1} parent=1 // pred_check
      _
    $region19: #{tpu_custom_call.1} parent=1 // pred_check_branch
      %44 = sbr.rel (0) target = $region21
    $region20: #{tpu_custom_call.1} parent=1 // pred_region
      _
    $region21: #{tpu_custom_call.1} parent=1 // pred_fallthru
      _
    // Predicated region
    $region22: #{tpu_custom_call.1} parent=1 // pred_check
      _
    $region23: #{tpu_custom_call.1} parent=1 // pred_check_branch
      %46 = sbr.rel (0) target = $region25
    $region24: #{tpu_custom_call.1} parent=1 // pred_region
      %s48 = ssub.s32 2048, 2048
      %49 = vsyncadd [#allocation7], %s48
      %s50 = sshll.u32 [#allocation8], 4
      %s51 = int_to_ptr.vmem [resolvable:$true] %s50
      %56 = dma.hbm_to_vmem [thread:$0]  %s5, 2048, %s51, [#allocation7], 128, 128, 8
    $region25: #{tpu_custom_call.1} parent=1 // pred_fallthru
      _
    // Predicated region
    $region26: #{tpu_custom_call.1} parent=1 // pred_check
      _
    $region27: #{tpu_custom_call.1} parent=1 // pred_check_branch
      %58 = sbr.rel (0) target = $region29
    $region28: #{tpu_custom_call.1} parent=1 // pred_region
      _
    $region29: #{tpu_custom_call.1} parent=1 // pred_fallthru
      _
    // Predicated region
    $region30: #{tpu_custom_call.1} parent=1 // pred_check
      _
    $region31: #{tpu_custom_call.1} parent=1 // pred_check_branch
      %60 = sbr.rel (0) target = $region33
    $region32: #{tpu_custom_call.1} parent=1 // pred_region
      %61 = dma.done [#allocation4], 128
    $region33: #{tpu_custom_call.1} parent=1 // pred_fallthru
      _
    // Predicated region
    $region34: #{tpu_custom_call.1} parent=1 // pred_check
      _
    $region35: #{tpu_custom_call.1} parent=1 // pred_check_branch
      %63 = sbr.rel (0) target = $region37
    $region36: #{tpu_custom_call.1} parent=1 // pred_region
      %64 = dma.done [#allocation7], 1024
    $region37: #{tpu_custom_call.1} parent=1 // pred_fallthru
      _
    // Predicated region
    $region38: #{tpu_custom_call.1} parent=1 // pred_check
      _
    $region39: #{tpu_custom_call.1} parent=1 // pred_check_branch
      %66 = sbr.rel (0) target = $region41
    $region40: #{tpu_custom_call.1} parent=1 // pred_region
      %67 = dma.done [#allocation7], 2048
    $region41: #{tpu_custom_call.1} parent=1 // pred_fallthru
      _
    %p69 = scmp.eq.s32.totalorder 0, 0
    // Predicated region
    $region42: #{tpu_custom_call.1} parent=1 // pred_check
      %p70 = pneg %p69
    $region43: #{tpu_custom_call.1} parent=1 // pred_check_branch
      %72 = sbr.rel (%p70) target = $region45
    $region44: #{tpu_custom_call.1} parent=1 // pred_region
      %v73 = vld [vmem:[#allocation3] sm:$0xf]
      %v74 = vld [vmem:[#allocation3 + $0x4] sm:$0xf]
      %v75 = vld [vmem:[#allocation6] sm:$0xf]
      %v76 = vld [vmem:[#allocation6 + $0x4] sm:$0xf]
      %v77 = vld [vmem:[#allocation6 + $0x8] sm:$0xf]
      %v78 = vld [vmem:[#allocation6 + $0xc] sm:$0xf]
      %v79 = vld [vmem:[#allocation6 + $0x10] sm:$0xf]
      %v80 = vld [vmem:[#allocation6 + $0x14] sm:$0xf]
      %v81 = vld [vmem:[#allocation6 + $0x18] sm:$0xf]
      %v82 = vld [vmem:[#allocation6 + $0x1c] sm:$0xf]
      %v83 = vld [vmem:[#allocation6 + $0x20] sm:$0xf]
      %v84 = vld [vmem:[#allocation6 + $0x24] sm:$0xf]
      %v85 = vld [vmem:[#allocation6 + $0x28] sm:$0xf]
      %v86 = vld [vmem:[#allocation6 + $0x2c] sm:$0xf]
      %v87 = vld [vmem:[#allocation6 + $0x30] sm:$0xf]
      %v88 = vld [vmem:[#allocation6 + $0x34] sm:$0xf]
      %v89 = vld [vmem:[#allocation6 + $0x38] sm:$0xf]
      %v90 = vld [vmem:[#allocation6 + $0x3c] sm:$0xf]
      %v91 = vld [vmem:[%s2] sm:$0x1]
      %v93 = vlaneseq
      %v94 = vshrl.u32 %v93, 7
      %v95 = vsub.s32 0, %v94
      %v96 = vrot.slane %v91, %v95
      %v100 = vunpack.c.l.b16 %v73
      %v101 = vunpack.c.l.b16 %v74
      %v102 = vpack.c.b16 %v101, %v100
      %v120 = vunpack.c.l.b16 %v75
      %v121 = vunpack.c.l.b16 %v76
      %v122 = vunpack.c.l.b16 %v77
      %v123 = vunpack.c.l.b16 %v78
      %v124 = vunpack.c.l.b16 %v79
      %v125 = vunpack.c.l.b16 %v80
      %v126 = vunpack.c.l.b16 %v81
      %v127 = vunpack.c.l.b16 %v82
      %v128 = vunpack.c.l.b16 %v83
      %v129 = vunpack.c.l.b16 %v84
      %v130 = vunpack.c.l.b16 %v85
      %v131 = vunpack.c.l.b16 %v86
      %v132 = vunpack.c.l.b16 %v87
      %v133 = vunpack.c.l.b16 %v88
      %v134 = vunpack.c.l.b16 %v89
      %v135 = vunpack.c.l.b16 %v90
      %v136 = vpack.c.b16 %v121, %v120
      %v137 = vpack.c.b16 %v123, %v122
      %v138 = vpack.c.b16 %v125, %v124
      %v139 = vpack.c.b16 %v127, %v126
      %v140 = vpack.c.b16 %v129, %v128
      %v141 = vpack.c.b16 %v131, %v130
      %v142 = vpack.c.b16 %v133, %v132
      %v143 = vpack.c.b16 %v135, %v134
      %152 = vmatprep.subr.bf16.mxu0 0
      %153 = vmatpush1.bf16.msra.mxu0 %v143
      %154 = vmatprep.subr.bf16.mxu0 0
      %155 = vmatpush1.bf16.msra.mxu0 %v142
      %156 = vmatprep.subr.bf16.mxu0 0
      %157 = vmatpush1.bf16.msra.mxu0 %v141
      %158 = vmatprep.subr.bf16.mxu0 0
      %159 = vmatpush1.bf16.msra.mxu0 %v140
      %160 = vmatprep.subr.bf16.mxu0 0
      %161 = vmatpush1.bf16.msra.mxu0 %v139
      %162 = vmatprep.subr.bf16.mxu0 0
      %163 = vmatpush1.bf16.msra.mxu0 %v138
      %164 = vmatprep.subr.bf16.mxu0 0
      %165 = vmatpush1.bf16.msra.mxu0 %v137
      %166 = vmatprep.subr.bf16.mxu0 0
      %167 = vmatpush1.bf16.msra.mxu0 %v136
      %168 = vmatprep.subr.bf16.mxu0 0
      %169 = vmatpush2.bf16.msra.mxu0 0
      %170 = vmatprep.subr.bf16.mxu0 0
      %171 = vmatpush2.bf16.msra.mxu0 0
      %172 = vmatprep.subr.bf16.mxu0 0
      %173 = vmatpush2.bf16.msra.mxu0 0
      %174 = vmatprep.subr.bf16.mxu0 0
      %175 = vmatpush2.bf16.msra.mxu0 0
      %176 = vmatprep.subr.bf16.mxu0 0
      %177 = vmatpush2.bf16.msra.mxu0 0
      %178 = vmatprep.subr.bf16.mxu0 0
      %179 = vmatpush2.bf16.msra.mxu0 0
      %180 = vmatprep.subr.bf16.mxu0 0
      %181 = vmatpush2.bf16.msra.mxu0 0
      %182 = vmatprep.subr.bf16.mxu0 0
      %183 = vmatpush2.bf16.msra.mxu0 0
      %184 = vmatprep.mubr.bf16.mxu0 0
      %185 = vmatmul.mubr.bf16.gmra.mxu0 %v102
      %v186 = vpop.f32.mrf.mxu0
      %v187 = vadd.f32 %v96, %v186
      %v188 = vpop.f32.mrf.mxu0
      %v189 = vpop.f32.mrf.mxu0
      %v190 = vadd.f32 %v96, %v189
      %v191 = vpop.f32.mrf.mxu0
      %192 = vdwg.mxu0
      %v193 = vmul.f32 %v187, 0.5
      %v194 = vmul.f32 %v190, 0.5
      %v195 = vrcp.pop 1.4142135
      %v196 = vmul.f32 %v187, %v195
      %v197 = vmul.f32 %v190, %v195
      %v198 = verf.f32.pop %v196
      %v199 = verf.f32.pop %v197
      %v200 = vadd.f32 %v198, 1.0
      %v201 = vadd.f32 %v199, 1.0
      %v202 = vmul.f32 %v193, %v200
      %v203 = vmul.f32 %v194, %v201
      %204 = vadd.xlane.f32.xlu0 %v202
      %v205 = vpop.xlane.xlu0 %204
      %206 = vadd.xlane.f32.xlu0 %v203
      %v207 = vpop.xlane.xlu0 %206
      %v208 = vrcp.pop 128.0
      %v209 = vmul.f32 %v205, %v208
      %v210 = vmul.f32 %v207, %v208
      %v211 = vsub.f32 %v202, %v209
      %v212 = vsub.f32 %v203, %v210
      %v213 = vmul.f32 %v211, %v211
      %v214 = vmul.f32 %v212, %v212
      %215 = vadd.xlane.f32.xlu0 %v213
      %v216 = vpop.xlane.xlu0 %215
      %217 = vadd.xlane.f32.xlu0 %v214
      %v218 = vpop.xlane.xlu0 %217
      %v219 = vmul.f32 %v216, %v208
      %v220 = vmul.f32 %v218, %v208
      %v221 = vadd.f32 %v219, 1e-12
      %v222 = vadd.f32 %v220, 1e-12
      %v223 = vrsqrt.pop %v221
      %v224 = vrsqrt.pop %v222
      %v225 = vmul.f32 %v211, %v223
      %v226 = vmul.f32 %v212, %v224
      %v227 = vld [vmem:[%s3] sm:$0x1]
      %v229 = vlaneseq
      %v230 = vshrl.u32 %v229, 7
      %v231 = vsub.s32 0, %v230
      %v232 = vrot.slane %v227, %v231
      %v234 = vmul.f32 %v225, %v232
      %v235 = vmul.f32 %v226, %v232
      %v236 = vld [vmem:[%s4] sm:$0x1]
      %v238 = vlaneseq
      %v239 = vshrl.u32 %v238, 7
      %v240 = vsub.s32 0, %v239
      %v241 = vrot.slane %v236, %v240
      %v243 = vadd.f32 %v234, %v241
      %v244 = vadd.f32 %v235, %v241
      %245 = vst [vmem:[#allocation2] sm:$0xff] %v243
      %246 = vst [vmem:[#allocation2 + $0x8] sm:$0xff] %v244
    $region45: #{tpu_custom_call.1} parent=1 // pred_fallthru
      _
    %v247 = vld [vmem:[#allocation2] sm:$0xff]
    %v248 = vld [vmem:[#allocation2 + $0x8] sm:$0xff]
    %v249 = vpack.c.bf16 %v248, %v247
    %v250 = vld [vmem:[#allocation8] sm:$0xff]
    %v251 = vld [vmem:[#allocation8 + $0x8] sm:$0xff]
    %v252 = vld [vmem:[#allocation8 + $0x10] sm:$0xff]
    %v253 = vld [vmem:[#allocation8 + $0x18] sm:$0xff]
    %v254 = vld [vmem:[#allocation8 + $0x20] sm:$0xff]
    %v255 = vld [vmem:[#allocation8 + $0x28] sm:$0xff]
    %v256 = vld [vmem:[#allocation8 + $0x30] sm:$0xff]
    %v257 = vld [vmem:[#allocation8 + $0x38] sm:$0xff]
    %v258 = vld [vmem:[#allocation8 + $0x40] sm:$0xff]
    %v259 = vld [vmem:[#allocation8 + $0x48] sm:$0xff]
    %v260 = vld [vmem:[#allocation8 + $0x50] sm:$0xff]
    %v261 = vld [vmem:[#allocation8 + $0x58] sm:$0xff]
    %v262 = vld [vmem:[#allocation8 + $0x60] sm:$0xff]
    %v263 = vld [vmem:[#allocation8 + $0x68] sm:$0xff]
    %v264 = vld [vmem:[#allocation8 + $0x70] sm:$0xff]
    %v265 = vld [vmem:[#allocation8 + $0x78] sm:$0xff]
    %v266 = vld [vmem:[%s6] sm:$0x3]
    %v268 = vlaneseq
    %v269 = vshrl.u32 %v268, 7
    %v270 = vsub.s32 0, %v269
    %v271 = vrot.slane %v266, %v270
    %v272 = vlaneseq
    %v273 = vshrl.u32 %v272, 7
    %v274 = vsub.s32 1, %v273
    %v275 = vrot.slane %v266, %v274
    %v294 = vunpack.c.l.b16 %v250
    %v295 = vunpack.c.h.b16 %v250
    %v296 = vunpack.c.l.b16 %v251
    %v297 = vunpack.c.h.b16 %v251
    %v298 = vunpack.c.l.b16 %v252
    %v299 = vunpack.c.h.b16 %v252
    %v300 = vunpack.c.l.b16 %v253
    %v301 = vunpack.c.h.b16 %v253
    %v302 = vunpack.c.l.b16 %v254
    %v303 = vunpack.c.h.b16 %v254
    %v304 = vunpack.c.l.b16 %v255
    %v305 = vunpack.c.h.b16 %v255
    %v306 = vunpack.c.l.b16 %v256
    %v307 = vunpack.c.h.b16 %v256
    %v308 = vunpack.c.l.b16 %v257
    %v309 = vunpack.c.h.b16 %v257
    %v310 = vunpack.c.l.b16 %v258
    %v311 = vunpack.c.h.b16 %v258
    %v312 = vunpack.c.l.b16 %v259
    %v313 = vunpack.c.h.b16 %v259
    %v314 = vunpack.c.l.b16 %v260
    %v315 = vunpack.c.h.b16 %v260
    %v316 = vunpack.c.l.b16 %v261
    %v317 = vunpack.c.h.b16 %v261
    %v318 = vunpack.c.l.b16 %v262
    %v319 = vunpack.c.h.b16 %v262
    %v320 = vunpack.c.l.b16 %v263
    %v321 = vunpack.c.h.b16 %v263
    %v322 = vunpack.c.l.b16 %v264
    %v323 = vunpack.c.h.b16 %v264
    %v324 = vunpack.c.l.b16 %v265
    %v325 = vunpack.c.h.b16 %v265
    %v326 = vpack.c.b16 %v296, %v294
    %v327 = vpack.c.b16 %v297, %v295
    %v328 = vpack.c.b16 %v300, %v298
    %v329 = vpack.c.b16 %v301, %v299
    %v330 = vpack.c.b16 %v304, %v302
    %v331 = vpack.c.b16 %v305, %v303
    %v332 = vpack.c.b16 %v308, %v306
    %v333 = vpack.c.b16 %v309, %v307
    %v334 = vpack.c.b16 %v312, %v310
    %v335 = vpack.c.b16 %v313, %v311
    %v336 = vpack.c.b16 %v316, %v314
    %v337 = vpack.c.b16 %v317, %v315
    %v338 = vpack.c.b16 %v320, %v318
    %v339 = vpack.c.b16 %v321, %v319
    %v340 = vpack.c.b16 %v324, %v322
    %v341 = vpack.c.b16 %v325, %v323
    %358 = vmatprep.subr.bf16.mxu0 %v341
    %359 = vmatpush1.bf16.msra.mxu0 %v340
    %360 = vmatprep.subr.bf16.mxu0 %v339
    %361 = vmatpush1.bf16.msra.mxu0 %v338
    %362 = vmatprep.subr.bf16.mxu0 %v337
    %363 = vmatpush1.bf16.msra.mxu0 %v336
    %364 = vmatprep.subr.bf16.mxu0 %v335
    %365 = vmatpush1.bf16.msra.mxu0 %v334
    %366 = vmatprep.subr.bf16.mxu0 %v333
    %367 = vmatpush1.bf16.msra.mxu0 %v332
    %368 = vmatprep.subr.bf16.mxu0 %v331
    %369 = vmatpush1.bf16.msra.mxu0 %v330
    %370 = vmatprep.subr.bf16.mxu0 %v329
    %371 = vmatpush1.bf16.msra.mxu0 %v328
    %372 = vmatprep.subr.bf16.mxu0 %v327
    %373 = vmatpush1.bf16.msra.mxu0 %v326
    %374 = vmatprep.subr.bf16.mxu0 0
    %375 = vmatpush2.bf16.msra.mxu0 0
    %376 = vmatprep.subr.bf16.mxu0 0
    %377 = vmatpush2.bf16.msra.mxu0 0
    %378 = vmatprep.subr.bf16.mxu0 0
    %379 = vmatpush2.bf16.msra.mxu0 0
    %380 = vmatprep.subr.bf16.mxu0 0
    %381 = vmatpush2.bf16.msra.mxu0 0
    %382 = vmatprep.subr.bf16.mxu0 0
    %383 = vmatpush2.bf16.msra.mxu0 0
    %384 = vmatprep.subr.bf16.mxu0 0
    %385 = vmatpush2.bf16.msra.mxu0 0
    %386 = vmatprep.subr.bf16.mxu0 0
    %387 = vmatpush2.bf16.msra.mxu0 0
    %388 = vmatprep.subr.bf16.mxu0 0
    %389 = vmatpush2.bf16.msra.mxu0 0
    %390 = vmatprep.mubr.bf16.mxu0 0
    %391 = vmatmul.mubr.bf16.gmra.mxu0 %v249
    %v392 = vpop.f32.mrf.mxu0
    %v393 = vadd.f32 %v271, %v392
    %v394 = vpop.f32.mrf.mxu0
    %v395 = vadd.f32 %v275, %v394
    %v396 = vpop.f32.mrf.mxu0
    %v397 = vadd.f32 %v271, %v396
    %v398 = vpop.f32.mrf.mxu0
    %v399 = vadd.f32 %v275, %v398
    %400 = vdwg.mxu0
    %401 = vst [vmem:[#allocation9] sm:$0xff] %v393
    %402 = vst [vmem:[#allocation9 + $0x8] sm:$0xff] %v395
    %403 = vst [vmem:[#allocation9 + $0x10] sm:$0xff] %v397
    %404 = vst [vmem:[#allocation9 + $0x18] sm:$0xff] %v399
    // Predicated region
    $region46: #{tpu_custom_call.1} parent=1 // pred_check
      _
    $region47: #{tpu_custom_call.1} parent=1 // pred_check_branch
      %406 = sbr.rel (0) target = $region49
    $region48: #{tpu_custom_call.1} parent=1 // pred_region
      %s408 = ssub.s32 512, 512
      %409 = vsyncadd [#allocation5], %s408
      %s410 = sshll.u32 [#allocation9], 4
      %s411 = int_to_ptr.vmem [resolvable:$true] %s410
      %416 = dma.vmem_to_hbm [thread:$0]  %s411, 512, %s7, [#allocation5], 256, 256, 16
    $region49: #{tpu_custom_call.1} parent=1 // pred_fallthru
      _
    // Predicated region
    $region50: #{tpu_custom_call.1} parent=1 // pred_check
      _
    $region51: #{tpu_custom_call.1} parent=1 // pred_check_branch
      %418 = sbr.rel (0) target = $region53
    $region52: #{tpu_custom_call.1} parent=1 // pred_region
      %419 = dma.done [#allocation5], 512
    $region53: #{tpu_custom_call.1} parent=1 // pred_fallthru
      _
    %420 = vsyncpa [#allocation4], 1
    %421 = vsyncpa [#allocation7], 1
    %422 = vsyncpa [#allocation5], 1

</llo_original>
